<compile_context>
chip_gen: v7x
topology: tpu7x:2x2x1
jax: 0.10.0
libtpu: 0.0.40
codegen_flags: <defaults>
</compile_context>

<pallas_src>
import jax
import jax.numpy as jnp
from jax.experimental import pallas as pl
from jax.experimental.pallas import tpu as pltpu

HIDDEN_SIZE = 128
LEAKY_SLOPE = 0.01  # torch.nn.LeakyReLU default negative_slope
SUBLANE = 16        # safe sublane multiple for both f32 (8) and bf16 (16)


def _leaky_relu(x):
    return jnp.where(x > 0, x, LEAKY_SLOPE * x)


def mlp_kernel(x_ref, w1_ref, b1_ref, w2_ref, b2_ref, w3_ref, b3_ref, o_ref):
    cdt = w1_ref.dtype  # matmul operand dtype (f32 or bf16); accumulation is f32

    # linear1 + LeakyReLU (bias/activation in f32); cast the tile in-kernel so
    # the HBM read stays in the embeddings' native dtype.
    h = jnp.dot(x_ref[...].astype(cdt), w1_ref[...],
                preferred_element_type=jnp.float32)
    h = _leaky_relu(h + b1_ref[...])
    # dropout -> identity at inference

    # linear2 + LeakyReLU
    h = jnp.dot(h.astype(cdt), w2_ref[...], preferred_element_type=jnp.float32)
    h = _leaky_relu(h + b2_ref[...])
    # dropout -> identity at inference

    # linear3 (logits, narrow-L output: only useful bytes are written back)
    out = jnp.dot(h.astype(cdt), w3_ref[...], preferred_element_type=jnp.float32)
    o_ref[...] = (out + b3_ref[...]).astype(o_ref.dtype)


def bert_relevance_classifier(embeddings, params, *,
                              compute_dtype=jnp.float32, block_b=512):
    """Forward pass. embeddings: [B, E] (any float dtype). Returns [B, num_labels] f32."""
    B, E = embeddings.shape
    w1, b1, w2, b2, w3, b3 = params
    H = w1.shape[1]
    L = w3.shape[1]

    assert block_b % SUBLANE == 0, "block_b must be a multiple of 16"

    # --- batch tiling ---
    # Small B: one grid step with blk == B (block dims equal to full array dims
    # are always legal, so no batch padding is needed at all).
    # Large B: big tiles of block_b rows; the last block may be partial
    # (rows are independent, OOB reads are don't-care, OOB stores are dropped).
    blk = B if B <= block_b else block_b
    num_tiles = pl.cdiv(B, blk)

    # --- dtype plumbing: matmul operands in compute_dtype, biases in f32 ---
    # (weights are tiny and cast once; embeddings are cast per-tile in-kernel)
    w1c, w2c, w3c = (w.astype(compute_dtype) for w in (w1, w2, w3))
    b1f, b2f, b3f = (b.astype(jnp.float32) for b in (b1, b2, b3))

    def full_spec(shape):
        # small parameter array, fully resident, same block every grid step
        return pl.BlockSpec(shape, lambda i, _n=len(shape): (0,) * _n)

    x_item = jnp.dtype(embeddings.dtype).itemsize
    c_item = jnp.dtype(compute_dtype).itemsize
    param_bytes = ((w1c.size + w2c.size + w3c.size) * c_item
                   + (b1f.size + b2f.size + b3f.size) * 4)

    flops = 2 * B * (E * H + H * H + H * L)
    bytes_accessed = B * E * x_item + param_bytes + B * L * 4
    cost = pl.CostEstimate(flops=flops, transcendentals=0,
                           bytes_accessed=bytes_accessed)

    # VMEM budget: double-buffered x tile + out tile + (conservatively
    # double-buffered) params, with headroom; capped for v7x's 64 MiB VMEM.
    vmem_need = (2 * blk * E * x_item + 2 * blk * L * 4
                 + 2 * param_bytes + (2 << 20))
    vmem_limit = int(min(48 * 1024 * 1024,
                         max(32 * 1024 * 1024, 2 * vmem_need)))

    out = pl.pallas_call(
        mlp_kernel,
        out_shape=jax.ShapeDtypeStruct((B, L), jnp.float32),
        grid_spec=pl.GridSpec(
            grid=(num_tiles,),
            in_specs=[
                pl.BlockSpec((blk, E), lambda i: (i, 0)),  # embeddings tile
                full_spec((E, H)),                          # w1
                full_spec((1, H)),                          # b1
                full_spec((H, H)),                          # w2
                full_spec((1, H)),                          # b2
                full_spec((H, L)),                          # w3 (narrow)
                full_spec((1, L)),                          # b3 (narrow)
            ],
            out_specs=pl.BlockSpec((blk, L), lambda i: (i, 0)),
        ),
        compiler_params=pltpu.CompilerParams(
            dimension_semantics=("parallel",),
            vmem_limit_bytes=vmem_limit,
        ),
        cost_estimate=cost,
    )(embeddings, w1c, b1f, w2c, b2f, w3c, b3f)

    return out


def init_params(key, embedding_size, num_labels):
    """Deterministic torch.nn.Linear-style init (uniform +/- 1/sqrt(fan_in)),
    with weights stored as [in, out]."""
    ks = jax.random.split(key, 6)

    def linear(kw, kb, fan_in, fan_out):
        bound = 1.0 / jnp.sqrt(fan_in)
        w = jax.random.uniform(kw, (fan_in, fan_out), jnp.float32, -bound, bound)
        b = jax.random.uniform(kb, (1, fan_out), jnp.float32, -bound, bound)
        return w, b

    w1, b1 = linear(ks[0], ks[1], embedding_size, HIDDEN_SIZE)
    w2, b2 = linear(ks[2], ks[3], HIDDEN_SIZE, HIDDEN_SIZE)
    w3, b3 = linear(ks[4], ks[5], HIDDEN_SIZE, num_labels)
    return (w1, b1, w2, b2, w3, b3)


def reference_forward(embeddings, params):
    w1, b1, w2, b2, w3, b3 = params
    h = _leaky_relu(embeddings @ w1 + b1)
    h = _leaky_relu(h @ w2 + b2)
    return h @ w3 + b3


if __name__ == "__main__":
    # Small shapes consistent with the module's forward.
    batch = 16
    embedding_size = 32
    num_labels = 4

    key = jax.random.PRNGKey(0)
    k_emb, k_par = jax.random.split(key)

    embeddings = jax.random.normal(k_emb, (batch, embedding_size), jnp.float32)
    params = init_params(k_par, embedding_size, num_labels)

    ref = reference_forward(embeddings, params)

    # f32 matmul operands: exact match vs. reference.
    out_f32 = jax.block_until_ready(
        bert_relevance_classifier(embeddings, params, compute_dtype=jnp.float32))
    assert out_f32.shape == (batch, num_labels)
    assert jnp.allclose(out_f32, ref, atol=1e-5, rtol=1e-5), "f32 mismatch vs reference"

    # bf16 matmul operands (MXU fast path), f32 accumulation: looser tolerance.
    out_bf16 = jax.block_until_ready(
        bert_relevance_classifier(embeddings, params, compute_dtype=jnp.bfloat16))
    assert out_bf16.shape == (batch, num_labels)
    assert jnp.allclose(out_bf16, ref, atol=5e-2, rtol=5e-2), "bf16 mismatch vs reference"

    # Multi-tile grid with a partial last block (no batch padding anywhere).
    batch_big = 1000
    emb_big = jax.random.normal(jax.random.PRNGKey(1),
                                (batch_big, embedding_size), jnp.float32)
    ref_big = reference_forward(emb_big, params)
    out_big = jax.block_until_ready(
        bert_relevance_classifier(emb_big, params,
                                  compute_dtype=jnp.float32, block_b=256))
    assert out_big.shape == (batch_big, num_labels)
    assert jnp.allclose(out_big, ref_big, atol=2e-4, rtol=2e-4), \
        "partial-block mismatch vs reference"

    # TODO(synk): dropout is modeled as identity (inference mode); training-mode
    # stochastic dropout would use pltpu.prng_seed / prng_random_bits.
    print("KERNEL_OK")
</pallas_src>

<mosaic_0001>
module attributes {stable_mosaic.version = 11 : i64} {
  func.func @mlp_kernel(%arg0: i32, %arg1: memref<16x32xf32, #tpu.memory_space<vmem>>, %arg2: memref<32x128xf32, #tpu.memory_space<vmem>>, %arg3: memref<1x128xf32, #tpu.memory_space<vmem>>, %arg4: memref<128x128xf32, #tpu.memory_space<vmem>>, %arg5: memref<1x128xf32, #tpu.memory_space<vmem>>, %arg6: memref<128x4xf32, #tpu.memory_space<vmem>>, %arg7: memref<1x4xf32, #tpu.memory_space<vmem>>, %arg8: memref<16x4xf32, #tpu.memory_space<vmem>>) attributes {dimension_semantics = [#tpu.dimension_semantics<parallel>], iteration_bounds = array<i64: 1>, scalar_prefetch = 0 : i64, scratch_operands = 0 : i64, tpu.core_type = #tpu.core_type<tc>, window_params = [{transform_indices = @transform_0, window_bounds = array<i64: 16, 32>}, {pipeline_mode = #tpu.pipeline_mode<synchronous>, transform_indices = @transform_1, window_bounds = array<i64: 32, 128>}, {pipeline_mode = #tpu.pipeline_mode<synchronous>, transform_indices = @transform_2, window_bounds = array<i64: 1, 128>}, {pipeline_mode = #tpu.pipeline_mode<synchronous>, transform_indices = @transform_3, window_bounds = array<i64: 128, 128>}, {pipeline_mode = #tpu.pipeline_mode<synchronous>, transform_indices = @transform_4, window_bounds = array<i64: 1, 128>}, {pipeline_mode = #tpu.pipeline_mode<synchronous>, transform_indices = @transform_5, window_bounds = array<i64: 128, 4>}, {pipeline_mode = #tpu.pipeline_mode<synchronous>, transform_indices = @transform_6, window_bounds = array<i64: 1, 4>}, {transform_indices = @transform_7, window_bounds = array<i64: 16, 4>}]} {
    %c0 = arith.constant 0 : index
    %c0_0 = arith.constant 0 : index
    %0 = vector.load %arg1[%c0, %c0_0] : memref<16x32xf32, #tpu.memory_space<vmem>>, vector<16x32xf32>
    %c0_1 = arith.constant 0 : index
    %c0_2 = arith.constant 0 : index
    %1 = vector.load %arg2[%c0_1, %c0_2] : memref<32x128xf32, #tpu.memory_space<vmem>>, vector<32x128xf32>
    %cst = arith.constant dense<0.000000e+00> : vector<16x128xf32>
    %2 = tpu.matmul %0, %1, %cst {dimension_numbers = #tpu.dot_dimension_numbers<[1], [0], [0], [1], [0, 0, 1, 1], [], []>} : vector<16x32xf32>, vector<32x128xf32>, vector<16x128xf32> -> vector<16x128xf32>
    %c0_3 = arith.constant 0 : index
    %c0_4 = arith.constant 0 : index
    %3 = vector.load %arg3[%c0_3, %c0_4] : memref<1x128xf32, #tpu.memory_space<vmem>>, vector<1x128xf32>
    %4 = vector.broadcast %3 : vector<1x128xf32> to vector<16x128xf32>
    %5 = arith.addf %2, %4 : vector<16x128xf32>
    %cst_5 = arith.constant 0.000000e+00 : f32
    %6 = vector.broadcast %cst_5 : f32 to vector<16x128xf32>
    %7 = arith.cmpf ogt, %5, %6 : vector<16x128xf32>
    %cst_6 = arith.constant 0.00999999977 : f32
    %8 = vector.broadcast %cst_6 : f32 to vector<16x128xf32>
    %9 = arith.mulf %8, %5 : vector<16x128xf32>
    %10 = arith.select %7, %5, %9 : vector<16x128xi1>, vector<16x128xf32>
    %c0_7 = arith.constant 0 : index
    %c0_8 = arith.constant 0 : index
    %11 = vector.load %arg4[%c0_7, %c0_8] : memref<128x128xf32, #tpu.memory_space<vmem>>, vector<128x128xf32>
    %cst_9 = arith.constant dense<0.000000e+00> : vector<16x128xf32>
    %12 = tpu.matmul %10, %11, %cst_9 {dimension_numbers = #tpu.dot_dimension_numbers<[1], [0], [0], [1], [0, 0, 1, 1], [], []>} : vector<16x128xf32>, vector<128x128xf32>, vector<16x128xf32> -> vector<16x128xf32>
    %c0_10 = arith.constant 0 : index
    %c0_11 = arith.constant 0 : index
    %13 = vector.load %arg5[%c0_10, %c0_11] : memref<1x128xf32, #tpu.memory_space<vmem>>, vector<1x128xf32>
    %14 = vector.broadcast %13 : vector<1x128xf32> to vector<16x128xf32>
    %15 = arith.addf %12, %14 : vector<16x128xf32>
    %cst_12 = arith.constant 0.000000e+00 : f32
    %16 = vector.broadcast %cst_12 : f32 to vector<16x128xf32>
    %17 = arith.cmpf ogt, %15, %16 : vector<16x128xf32>
    %cst_13 = arith.constant 0.00999999977 : f32
    %18 = vector.broadcast %cst_13 : f32 to vector<16x128xf32>
    %19 = arith.mulf %18, %15 : vector<16x128xf32>
    %20 = arith.select %17, %15, %19 : vector<16x128xi1>, vector<16x128xf32>
    %c0_14 = arith.constant 0 : index
    %c0_15 = arith.constant 0 : index
    %21 = vector.load %arg6[%c0_14, %c0_15] : memref<128x4xf32, #tpu.memory_space<vmem>>, vector<128x4xf32>
    %cst_16 = arith.constant dense<0.000000e+00> : vector<16x4xf32>
    %22 = tpu.matmul %20, %21, %cst_16 {dimension_numbers = #tpu.dot_dimension_numbers<[1], [0], [0], [1], [0, 0, 1, 1], [], []>} : vector<16x128xf32>, vector<128x4xf32>, vector<16x4xf32> -> vector<16x4xf32>
    %c0_17 = arith.constant 0 : index
    %c0_18 = arith.constant 0 : index
    %23 = vector.load %arg7[%c0_17, %c0_18] : memref<1x4xf32, #tpu.memory_space<vmem>>, vector<1x4xf32>
    %24 = vector.broadcast %23 : vector<1x4xf32> to vector<16x4xf32>
    %25 = arith.addf %22, %24 : vector<16x4xf32>
    %c0_19 = arith.constant 0 : index
    %c0_20 = arith.constant 0 : index
    %26 = vector.load %arg8[%c0_19, %c0_20] : memref<16x4xf32, #tpu.memory_space<vmem>>, vector<16x4xf32>
    tpu.vector_store %arg8[%c0_19, %c0_20], %25 {strides = array<i32>} : memref<16x4xf32, #tpu.memory_space<vmem>>, vector<16x4xf32>,
    return
  }
  func.func @transform_0(%arg0: i32) -> (i32, i32) {
    %c0_i32 = arith.constant 0 : i32
    %c0_i32_0 = arith.constant 0 : i32
    return %arg0, %c0_i32 : i32, i32
  }
  func.func @transform_1(%arg0: i32) -> (i32, i32) {
    %c0_i32 = arith.constant 0 : i32
    %c0_i32_0 = arith.constant 0 : i32
    %c0_i32_1 = arith.constant 0 : i32
    return %c0_i32, %c0_i32_0 : i32, i32
  }
  func.func @transform_2(%arg0: i32) -> (i32, i32) {
    %c0_i32 = arith.constant 0 : i32
    %c0_i32_0 = arith.constant 0 : i32
    %c0_i32_1 = arith.constant 0 : i32
    return %c0_i32, %c0_i32_0 : i32, i32
  }
  func.func @transform_3(%arg0: i32) -> (i32, i32) {
    %c0_i32 = arith.constant 0 : i32
    %c0_i32_0 = arith.constant 0 : i32
    %c0_i32_1 = arith.constant 0 : i32
    return %c0_i32, %c0_i32_0 : i32, i32
  }
  func.func @transform_4(%arg0: i32) -> (i32, i32) {
    %c0_i32 = arith.constant 0 : i32
    %c0_i32_0 = arith.constant 0 : i32
    %c0_i32_1 = arith.constant 0 : i32
    return %c0_i32, %c0_i32_0 : i32, i32
  }
  func.func @transform_5(%arg0: i32) -> (i32, i32) {
    %c0_i32 = arith.constant 0 : i32
    %c0_i32_0 = arith.constant 0 : i32
    %c0_i32_1 = arith.constant 0 : i32
    return %c0_i32, %c0_i32_0 : i32, i32
  }
  func.func @transform_6(%arg0: i32) -> (i32, i32) {
    %c0_i32 = arith.constant 0 : i32
    %c0_i32_0 = arith.constant 0 : i32
    %c0_i32_1 = arith.constant 0 : i32
    return %c0_i32, %c0_i32_0 : i32, i32
  }
  func.func @transform_7(%arg0: i32) -> (i32, i32) {
    %c0_i32 = arith.constant 0 : i32
    %c0_i32_0 = arith.constant 0 : i32
    return %arg0, %c0_i32 : i32, i32
  }
}

</mosaic_0001>

<llo_original>
// kernel: tpu_custom_call.1
$region0: #{tpu_custom_call.1}
  #allocation0 [shape = 'u32[]', space=smem, size = 0x4, offset = 0x4, fixed_abs, tag = 'smem constant byte address 0x4 - core index']
  #allocation1 [shape = 'u32[144,128]{1,0:T(1,128)}', space=vmem, size = 0x12000, scoped, tag = 'internal scratch']
  %s0 = inlined_call_operand.hbm [shape: f32[16,32], index: 0, kind: input, shape index: {}]
  %s1 = inlined_call_operand.hbm [shape: f32[32,128], index: 1, kind: input, shape index: {}]
  %s2 = inlined_call_operand.vmem [shape: f32[1,128], index: 2, kind: input, shape index: {}]
  %s3 = inlined_call_operand.vmem [shape: f32[128,128], index: 3, kind: input, shape index: {}]
  %s4 = inlined_call_operand.vmem [shape: f32[1,128], index: 4, kind: input, shape index: {}]
  %s5 = inlined_call_operand.vmem [shape: f32[128,4], index: 5, kind: input, shape index: {}]
  %s6 = inlined_call_operand.vmem [shape: f32[1,4], index: 6, kind: input, shape index: {}]
  %s7 = inlined_call_operand.vmem [shape: f32[16,4], index: 7, kind: output, shape index: {}]
  %s8 = sld [smem:[#allocation0]]
  $region46: #{tpu_custom_call.1} parent=0
    _
  %s10 = ssub.s32 1, %s8
  %s11 = scalar_select 0, %s10, %s8
  $region1: #{tpu_custom_call.1} parent=0
    #allocation2 [shape = 'u8[8192]{0}', space=vmem, size = 0x2000, scoped, tag = 'input window, operand 0, single buffered']
    #allocation3 [shape = 's32[1]{0}', space=sflag, size = 0x4, scoped, tag = 'scoped memory for tpu_custom_call.1']
    #allocation4 [shape = 'u8[16384]{0}', space=vmem, size = 0x4000, scoped, tag = 'input window, operand 1, single buffered']
    #allocation5 [shape = 's32[1]{0}', space=sflag, size = 0x4, scoped, tag = 'scoped memory for tpu_custom_call.1']
    %12 = vsyncpa [#allocation3], 0
    %13 = vsyncpa [#allocation5], 0
    // Predicated region
    $region2: #{tpu_custom_call.1} parent=1 // pred_check
      _
    $region3: #{tpu_custom_call.1} parent=1 // pred_check_branch
      %15 = sbr.rel (0) target = $region5
    $region4: #{tpu_custom_call.1} parent=1 // pred_region
      %s17 = ssub.s32 256, 256
      %18 = vsyncadd [#allocation3], %s17
      %s19 = sshll.u32 [#allocation2], 4
      %s20 = int_to_ptr.vmem [resolvable:$true] %s19
      %25 = dma.hbm_to_vmem [thread:$0]  %s0, 256, %s20, [#allocation3], 128, 128, 8
    $region5: #{tpu_custom_call.1} parent=1 // pred_fallthru
      _
    // Predicated region
    $region6: #{tpu_custom_call.1} parent=1 // pred_check
      _
    $region7: #{tpu_custom_call.1} parent=1 // pred_check_branch
      %27 = sbr.rel (0) target = $region9
    $region8: #{tpu_custom_call.1} parent=1 // pred_region
      %s29 = ssub.s32 512, 512
      %30 = vsyncadd [#allocation5], %s29
      %s31 = sshll.u32 [#allocation4], 4
      %s32 = int_to_ptr.vmem [resolvable:$true] %s31
      %37 = dma.hbm_to_vmem [thread:$0]  %s1, 512, %s32, [#allocation5], 128, 128, 8
    $region9: #{tpu_custom_call.1} parent=1 // pred_fallthru
      _
    // Predicated region
    $region10: #{tpu_custom_call.1} parent=1 // pred_check
      _
    $region11: #{tpu_custom_call.1} parent=1 // pred_check_branch
      %39 = sbr.rel (0) target = $region13
    $region12: #{tpu_custom_call.1} parent=1 // pred_region
      _
    $region13: #{tpu_custom_call.1} parent=1 // pred_fallthru
      _
    // Predicated region
    $region14: #{tpu_custom_call.1} parent=1 // pred_check
      _
    $region15: #{tpu_custom_call.1} parent=1 // pred_check_branch
      %41 = sbr.rel (0) target = $region17
    $region16: #{tpu_custom_call.1} parent=1 // pred_region
      _
    $region17: #{tpu_custom_call.1} parent=1 // pred_fallthru
      _
    // Predicated region
    $region18: #{tpu_custom_call.1} parent=1 // pred_check
      _
    $region19: #{tpu_custom_call.1} parent=1 // pred_check_branch
      %43 = sbr.rel (0) target = $region21
    $region20: #{tpu_custom_call.1} parent=1 // pred_region
      _
    $region21: #{tpu_custom_call.1} parent=1 // pred_fallthru
      _
    // Predicated region
    $region22: #{tpu_custom_call.1} parent=1 // pred_check
      _
    $region23: #{tpu_custom_call.1} parent=1 // pred_check_branch
      %45 = sbr.rel (0) target = $region25
    $region24: #{tpu_custom_call.1} parent=1 // pred_region
      _
    $region25: #{tpu_custom_call.1} parent=1 // pred_fallthru
      _
    // Predicated region
    $region26: #{tpu_custom_call.1} parent=1 // pred_check
      _
    $region27: #{tpu_custom_call.1} parent=1 // pred_check_branch
      %47 = sbr.rel (0) target = $region29
    $region28: #{tpu_custom_call.1} parent=1 // pred_region
      _
    $region29: #{tpu_custom_call.1} parent=1 // pred_fallthru
      _
    // Predicated region
    $region30: #{tpu_custom_call.1} parent=1 // pred_check
      _
    $region31: #{tpu_custom_call.1} parent=1 // pred_check_branch
      %49 = sbr.rel (0) target = $region33
    $region32: #{tpu_custom_call.1} parent=1 // pred_region
      %50 = dma.done [#allocation3], 256
    $region33: #{tpu_custom_call.1} parent=1 // pred_fallthru
      _
    // Predicated region
    $region34: #{tpu_custom_call.1} parent=1 // pred_check
      _
    $region35: #{tpu_custom_call.1} parent=1 // pred_check_branch
      %52 = sbr.rel (0) target = $region37
    $region36: #{tpu_custom_call.1} parent=1 // pred_region
      %53 = dma.done [#allocation5], 512
    $region37: #{tpu_custom_call.1} parent=1 // pred_fallthru
      _
    %v54 = vld [vmem:[#allocation2] sm:$0xff]
    %v55 = vld [vmem:[#allocation2 + $0x8] sm:$0xff]
    %v56 = vld [vmem:[#allocation4] sm:$0xff]
    %v57 = vld [vmem:[#allocation4 + $0x8] sm:$0xff]
    %v58 = vld [vmem:[#allocation4 + $0x10] sm:$0xff]
    %v59 = vld [vmem:[#allocation4 + $0x18] sm:$0xff]
    %v60 = vld [vmem:[%s2] sm:$0x1]
    %v62 = vlaneseq
    %v63 = vshrl.u32 %v62, 7
    %v64 = vsub.s32 0, %v63
    %v65 = vrot.slane %v60, %v64
    %vm67 = vcmask 261120
    %v69 = vsel %vm67, %v54, 0
    %v72 = vsel %vm67, %v55, 0
    %74 = vmatprep.subr.mxu0 0.0
    %75 = vmatpush1.msra.mxu0 %v56
    %76 = vmatprep.subr.mxu0 0.0
    %77 = vmatpush1.msra.mxu0 %v57
    %78 = vmatprep.subr.mxu0 0.0
    %79 = vmatpush1.msra.mxu0 %v58
    %80 = vmatprep.subr.mxu0 0.0
    %81 = vmatpush1.msra.mxu0 %v59
    %82 = vmatprep.subr.mxu0 0.0
    %83 = vmatpush1.msra.mxu0 0.0
    %84 = vmatprep.subr.mxu0 0.0
    %85 = vmatpush1.msra.mxu0 0.0
    %86 = vmatprep.subr.mxu0 0.0
    %87 = vmatpush1.msra.mxu0 0.0
    %88 = vmatprep.subr.mxu0 0.0
    %89 = vmatpush1.msra.mxu0 0.0
    %90 = vmatprep.subr.mxu0 0.0
    %91 = vmatpush1.msra.mxu0 0.0
    %92 = vmatprep.subr.mxu0 0.0
    %93 = vmatpush1.msra.mxu0 0.0
    %94 = vmatprep.subr.mxu0 0.0
    %95 = vmatpush1.msra.mxu0 0.0
    %96 = vmatprep.subr.mxu0 0.0
    %97 = vmatpush1.msra.mxu0 0.0
    %98 = vmatprep.subr.mxu0 0.0
    %99 = vmatpush1.msra.mxu0 0.0
    %100 = vmatprep.subr.mxu0 0.0
    %101 = vmatpush1.msra.mxu0 0.0
    %102 = vmatprep.subr.mxu0 0.0
    %103 = vmatpush1.msra.mxu0 0.0
    %104 = vmatprep.subr.mxu0 0.0
    %105 = vmatpush1.msra.mxu0 0.0
    %106 = vmatprep.subr.mxu0 0.0
    %107 = vmatpush1.msra.mxu0 0.0
    %108 = vmatprep.subr.mxu0 0.0
    %109 = vmatpush1.msra.mxu0 0.0
    %110 = vmatprep.subr.mxu0 0.0
    %111 = vmatpush1.msra.mxu0 0.0
    %112 = vmatprep.subr.mxu0 0.0
    %113 = vmatpush1.msra.mxu0 0.0
    %114 = vmatprep.subr.mxu0 0.0
    %115 = vmatpush1.msra.mxu0 0.0
    %116 = vmatprep.subr.mxu0 0.0
    %117 = vmatpush1.msra.mxu0 0.0
    %118 = vmatprep.subr.mxu0 0.0
    %119 = vmatpush1.msra.mxu0 0.0
    %120 = vmatprep.subr.mxu0 0.0
    %121 = vmatpush1.msra.mxu0 0.0
    %122 = vmatprep.subr.mxu0 0.0
    %123 = vmatpush1.msra.mxu0 0.0
    %124 = vmatprep.subr.mxu0 0.0
    %125 = vmatpush1.msra.mxu0 0.0
    %126 = vmatprep.subr.mxu0 0.0
    %127 = vmatpush1.msra.mxu0 0.0
    %128 = vmatprep.subr.mxu0 0.0
    %129 = vmatpush1.msra.mxu0 0.0
    %130 = vmatprep.subr.mxu0 0.0
    %131 = vmatpush1.msra.mxu0 0.0
    %132 = vmatprep.subr.mxu0 0.0
    %133 = vmatpush1.msra.mxu0 0.0
    %134 = vmatprep.subr.mxu0 0.0
    %135 = vmatpush1.msra.mxu0 0.0
    %136 = vmatprep.subr.mxu0 0.0
    %137 = vmatpush1.msra.mxu0 0.0
    %138 = vmatprep.mubr.f32.mxu0 0.0
    %139 = vmatmul.mubr.f32.gmra.mrb[0].mxu0 %v69
    %v140 = vpop.f32.mrb[0].mxu0
    %v141 = vadd.f32 %v65, %v140
    %v142 = vpop.f32.mrb[0].mxu0
    %143 = vmatprep.mubr.f32.mxu0 0.0
    %144 = vmatmul.mubr.f32.gmra.mrb[0].mxu0 %v72
    %v145 = vpop.f32.mrb[0].mxu0
    %v146 = vadd.f32 %v65, %v145
    %v147 = vpop.f32.mrb[0].mxu0
    %148 = vdwg.mxu0
    %vm149 = vcmp.gt.f32.partialorder %v141, 0.0
    %vm150 = vcmp.gt.f32.partialorder %v146, 0.0
    %v151 = vmul.f32 %v141, 0.01
    %v152 = vmul.f32 %v146, 0.01
    %v153 = vsel %vm149, %v141, %v151
    %v154 = vsel %vm150, %v146, %v152
    %v155 = vld [vmem:[%s3] sm:$0xff]
    %v156 = vld [vmem:[%s3 + $0x8] sm:$0xff]
    %v157 = vld [vmem:[%s3 + $0x10] sm:$0xff]
    %v158 = vld [vmem:[%s3 + $0x18] sm:$0xff]
    %v159 = vld [vmem:[%s3 + $0x20] sm:$0xff]
    %v160 = vld [vmem:[%s3 + $0x28] sm:$0xff]
    %v161 = vld [vmem:[%s3 + $0x30] sm:$0xff]
    %v162 = vld [vmem:[%s3 + $0x38] sm:$0xff]
    %v163 = vld [vmem:[%s3 + $0x40] sm:$0xff]
    %v164 = vld [vmem:[%s3 + $0x48] sm:$0xff]
    %v165 = vld [vmem:[%s3 + $0x50] sm:$0xff]
    %v166 = vld [vmem:[%s3 + $0x58] sm:$0xff]
    %v167 = vld [vmem:[%s3 + $0x60] sm:$0xff]
    %v168 = vld [vmem:[%s3 + $0x68] sm:$0xff]
    %v169 = vld [vmem:[%s3 + $0x70] sm:$0xff]
    %v170 = vld [vmem:[%s3 + $0x78] sm:$0xff]
    %v171 = vld [vmem:[%s4] sm:$0x1]
    %v173 = vlaneseq
    %v174 = vshrl.u32 %v173, 7
    %v175 = vsub.s32 0, %v174
    %v176 = vrot.slane %v171, %v175
    %178 = vmatprep.subr.mxu0 0.0
    %179 = vmatpush1.msra.mxu0 %v155
    %180 = vmatprep.subr.mxu0 0.0
    %181 = vmatpush1.msra.mxu0 %v156
    %182 = vmatprep.subr.mxu0 0.0
    %183 = vmatpush1.msra.mxu0 %v157
    %184 = vmatprep.subr.mxu0 0.0
    %185 = vmatpush1.msra.mxu0 %v158
    %186 = vmatprep.subr.mxu0 0.0
    %187 = vmatpush1.msra.mxu0 %v159
    %188 = vmatprep.subr.mxu0 0.0
    %189 = vmatpush1.msra.mxu0 %v160
    %190 = vmatprep.subr.mxu0 0.0
    %191 = vmatpush1.msra.mxu0 %v161
    %192 = vmatprep.subr.mxu0 0.0
    %193 = vmatpush1.msra.mxu0 %v162
    %194 = vmatprep.subr.mxu0 0.0
    %195 = vmatpush1.msra.mxu0 %v163
    %196 = vmatprep.subr.mxu0 0.0
    %197 = vmatpush1.msra.mxu0 %v164
    %198 = vmatprep.subr.mxu0 0.0
    %199 = vmatpush1.msra.mxu0 %v165
    %200 = vmatprep.subr.mxu0 0.0
    %201 = vmatpush1.msra.mxu0 %v166
    %202 = vmatprep.subr.mxu0 0.0
    %203 = vmatpush1.msra.mxu0 %v167
    %204 = vmatprep.subr.mxu0 0.0
    %205 = vmatpush1.msra.mxu0 %v168
    %206 = vmatprep.subr.mxu0 0.0
    %207 = vmatpush1.msra.mxu0 %v169
    %208 = vmatprep.subr.mxu0 0.0
    %209 = vmatpush1.msra.mxu0 %v170
    %210 = vmatprep.subr.mxu0 0.0
    %211 = vmatpush1.msra.mxu0 0.0
    %212 = vmatprep.subr.mxu0 0.0
    %213 = vmatpush1.msra.mxu0 0.0
    %214 = vmatprep.subr.mxu0 0.0
    %215 = vmatpush1.msra.mxu0 0.0
    %216 = vmatprep.subr.mxu0 0.0
    %217 = vmatpush1.msra.mxu0 0.0
    %218 = vmatprep.subr.mxu0 0.0
    %219 = vmatpush1.msra.mxu0 0.0
    %220 = vmatprep.subr.mxu0 0.0
    %221 = vmatpush1.msra.mxu0 0.0
    %222 = vmatprep.subr.mxu0 0.0
    %223 = vmatpush1.msra.mxu0 0.0
    %224 = vmatprep.subr.mxu0 0.0
    %225 = vmatpush1.msra.mxu0 0.0
    %226 = vmatprep.subr.mxu0 0.0
    %227 = vmatpush1.msra.mxu0 0.0
    %228 = vmatprep.subr.mxu0 0.0
    %229 = vmatpush1.msra.mxu0 0.0
    %230 = vmatprep.subr.mxu0 0.0
    %231 = vmatpush1.msra.mxu0 0.0
    %232 = vmatprep.subr.mxu0 0.0
    %233 = vmatpush1.msra.mxu0 0.0
    %234 = vmatprep.subr.mxu0 0.0
    %235 = vmatpush1.msra.mxu0 0.0
    %236 = vmatprep.subr.mxu0 0.0
    %237 = vmatpush1.msra.mxu0 0.0
    %238 = vmatprep.subr.mxu0 0.0
    %239 = vmatpush1.msra.mxu0 0.0
    %240 = vmatprep.subr.mxu0 0.0
    %241 = vmatpush1.msra.mxu0 0.0
    %242 = vmatprep.mubr.f32.mxu0 0.0
    %243 = vmatmul.mubr.f32.gmra.mrb[0].mxu0 %v153
    %v244 = vpop.f32.mrb[0].mxu0
    %v245 = vadd.f32 %v176, %v244
    %v246 = vpop.f32.mrb[0].mxu0
    %247 = vmatprep.mubr.f32.mxu0 0.0
    %248 = vmatmul.mubr.f32.gmra.mrb[0].mxu0 %v154
    %v249 = vpop.f32.mrb[0].mxu0
    %v250 = vadd.f32 %v176, %v249
    %v251 = vpop.f32.mrb[0].mxu0
    %252 = vdwg.mxu0
    %vm253 = vcmp.gt.f32.partialorder %v245, 0.0
    %vm254 = vcmp.gt.f32.partialorder %v250, 0.0
    %v255 = vmul.f32 %v245, 0.01
    %v256 = vmul.f32 %v250, 0.01
    %v257 = vsel %vm253, %v245, %v255
    %v258 = vsel %vm254, %v250, %v256
    %v259 = vld [vmem:[%s5] sm:$0xff]
    %v260 = vld [vmem:[%s5 + $0x8] sm:$0xff]
    %v261 = vld [vmem:[%s5 + $0x10] sm:$0xff]
    %v262 = vld [vmem:[%s5 + $0x18] sm:$0xff]
    %v263 = vld [vmem:[%s5 + $0x20] sm:$0xff]
    %v264 = vld [vmem:[%s5 + $0x28] sm:$0xff]
    %v265 = vld [vmem:[%s5 + $0x30] sm:$0xff]
    %v266 = vld [vmem:[%s5 + $0x38] sm:$0xff]
    %v267 = vld [vmem:[%s5 + $0x40] sm:$0xff]
    %v268 = vld [vmem:[%s5 + $0x48] sm:$0xff]
    %v269 = vld [vmem:[%s5 + $0x50] sm:$0xff]
    %v270 = vld [vmem:[%s5 + $0x58] sm:$0xff]
    %v271 = vld [vmem:[%s5 + $0x60] sm:$0xff]
    %v272 = vld [vmem:[%s5 + $0x68] sm:$0xff]
    %v273 = vld [vmem:[%s5 + $0x70] sm:$0xff]
    %v274 = vld [vmem:[%s5 + $0x78] sm:$0xff]
    %v275 = vld [vmem:[%s6] sm:$0x1]
    %v277 = vlaneseq
    %v278 = vshrl.u32 %v277, 7
    %v279 = vsub.s32 0, %v278
    %v280 = vrot.slane %v275, %v279
    %282 = vmatprep.subr.mxu0 0.0
    %283 = vmatpush1.msra.mxu0 %v259
    %284 = vmatprep.subr.mxu0 0.0
    %285 = vmatpush1.msra.mxu0 %v260
    %286 = vmatprep.subr.mxu0 0.0
    %287 = vmatpush1.msra.mxu0 %v261
    %288 = vmatprep.subr.mxu0 0.0
    %289 = vmatpush1.msra.mxu0 %v262
    %290 = vmatprep.subr.mxu0 0.0
    %291 = vmatpush1.msra.mxu0 %v263
    %292 = vmatprep.subr.mxu0 0.0
    %293 = vmatpush1.msra.mxu0 %v264
    %294 = vmatprep.subr.mxu0 0.0
    %295 = vmatpush1.msra.mxu0 %v265
    %296 = vmatprep.subr.mxu0 0.0
    %297 = vmatpush1.msra.mxu0 %v266
    %298 = vmatprep.subr.mxu0 0.0
    %299 = vmatpush1.msra.mxu0 %v267
    %300 = vmatprep.subr.mxu0 0.0
    %301 = vmatpush1.msra.mxu0 %v268
    %302 = vmatprep.subr.mxu0 0.0
    %303 = vmatpush1.msra.mxu0 %v269
    %304 = vmatprep.subr.mxu0 0.0
    %305 = vmatpush1.msra.mxu0 %v270
    %306 = vmatprep.subr.mxu0 0.0
    %307 = vmatpush1.msra.mxu0 %v271
    %308 = vmatprep.subr.mxu0 0.0
    %309 = vmatpush1.msra.mxu0 %v272
    %310 = vmatprep.subr.mxu0 0.0
    %311 = vmatpush1.msra.mxu0 %v273
    %312 = vmatprep.subr.mxu0 0.0
    %313 = vmatpush1.msra.mxu0 %v274
    %314 = vmatprep.subr.mxu0 0.0
    %315 = vmatpush1.msra.mxu0 0.0
    %316 = vmatprep.subr.mxu0 0.0
    %317 = vmatpush1.msra.mxu0 0.0
    %318 = vmatprep.subr.mxu0 0.0
    %319 = vmatpush1.msra.mxu0 0.0
    %320 = vmatprep.subr.mxu0 0.0
    %321 = vmatpush1.msra.mxu0 0.0
    %322 = vmatprep.subr.mxu0 0.0
    %323 = vmatpush1.msra.mxu0 0.0
    %324 = vmatprep.subr.mxu0 0.0
    %325 = vmatpush1.msra.mxu0 0.0
    %326 = vmatprep.subr.mxu0 0.0
    %327 = vmatpush1.msra.mxu0 0.0
    %328 = vmatprep.subr.mxu0 0.0
    %329 = vmatpush1.msra.mxu0 0.0
    %330 = vmatprep.subr.mxu0 0.0
    %331 = vmatpush1.msra.mxu0 0.0
    %332 = vmatprep.subr.mxu0 0.0
    %333 = vmatpush1.msra.mxu0 0.0
    %334 = vmatprep.subr.mxu0 0.0
    %335 = vmatpush1.msra.mxu0 0.0
    %336 = vmatprep.subr.mxu0 0.0
    %337 = vmatpush1.msra.mxu0 0.0
    %338 = vmatprep.subr.mxu0 0.0
    %339 = vmatpush1.msra.mxu0 0.0
    %340 = vmatprep.subr.mxu0 0.0
    %341 = vmatpush1.msra.mxu0 0.0
    %342 = vmatprep.subr.mxu0 0.0
    %343 = vmatpush1.msra.mxu0 0.0
    %344 = vmatprep.subr.mxu0 0.0
    %345 = vmatpush1.msra.mxu0 0.0
    %346 = vmatprep.mubr.f32.mxu0 0.0
    %347 = vmatmul.mubr.f32.gmra.mrb[0].mxu0 %v257
    %v348 = vpop.f32.mrb[0].mxu0
    %v349 = vadd.f32 %v280, %v348
    %v350 = vpop.f32.mrb[0].mxu0
    %351 = vmatprep.mubr.f32.mxu0 0.0
    %352 = vmatmul.mubr.f32.gmra.mrb[0].mxu0 %v258
    %v353 = vpop.f32.mrb[0].mxu0
    %v354 = vadd.f32 %v280, %v353
    %v355 = vpop.f32.mrb[0].mxu0
    %356 = vdwg.mxu0
    %vm357 = vcmask 31744
    %358 = vst.msk [vmem:[%s7] sm:$0xff] %vm357, %v349
    %359 = vst.msk [vmem:[%s7 + $0x8] sm:$0xff] %vm357, %v354
    // Predicated region
    $region38: #{tpu_custom_call.1} parent=1 // pred_check
      _
    $region39: #{tpu_custom_call.1} parent=1 // pred_check_branch
      %361 = sbr.rel (0) target = $region41
    $region40: #{tpu_custom_call.1} parent=1 // pred_region
      _
    $region41: #{tpu_custom_call.1} parent=1 // pred_fallthru
      _
    // Predicated region
    $region42: #{tpu_custom_call.1} parent=1 // pred_check
      _
    $region43: #{tpu_custom_call.1} parent=1 // pred_check_branch
      %363 = sbr.rel (0) target = $region45
    $region44: #{tpu_custom_call.1} parent=1 // pred_region
      _
    $region45: #{tpu_custom_call.1} parent=1 // pred_fallthru
      _
    %364 = vsyncpa [#allocation3], 1
    %365 = vsyncpa [#allocation5], 1

</llo_original>
